<compile_context>
chip_gen: v7x
topology: tpu7x:2x2x1
jax: 0.10.0
libtpu: 0.0.40
codegen_flags: <defaults>
</compile_context>

<pallas_src>
import functools

import jax
import jax.numpy as jnp
from jax.experimental import pallas as pl
from jax.experimental.pallas import tpu as pltpu


_SQRT_HALF = 0.7071067811865476


def _convmlp_kernel(x_ref, w1_ref, b1_ref, w2_ref, b2_ref, o_ref):
    """out = gelu(x @ W1 + b1) @ W2 + b2, applied row-wise on the current tile.

    Block-diagonal path (c divides 128):
      x_ref : (tile_rows, 128)   each 128-lane row = (128 // c) pixels x c channels
      w1_ref: (128, P*hid)       kron(I_P, W1)  (block diagonal)
      b1_ref: (1, P*hid)         b1 tiled per pixel slot
      w2_ref: (P*hid, 128)       kron(I_P, W2)
      b2_ref: (1, 128)
      o_ref : (tile_rows, 128)
    Fallback path (c does not divide 128): plain (pixels, channels) layout with
    the original small weights; same body.
    """
    x = x_ref[...]

    # (tile, K) @ (K, PH) -> f32 accumulate on the MXU, operands in input dtype.
    h = jnp.dot(x, w1_ref[...], preferred_element_type=jnp.float32)
    h = h + b1_ref[...].astype(jnp.float32)

    # Exact GELU (PyTorch F.gelu default, approximate='none').
    # NOTE: after the memory-layout fixes this kernel may become VALU-bound on
    # the erf polynomial; a tanh-approx GELU would move the transcendental to
    # the EUP slot, but that changes the module's exact-erf semantics, so the
    # exact form is kept.
    h = 0.5 * h * (1.0 + jax.lax.erf(h * jnp.float32(_SQRT_HALF)))

    # Cast activation back to input dtype so bf16 inputs take the bf16 MXU path.
    out = jnp.dot(h.astype(x.dtype), w2_ref[...],
                  preferred_element_type=jnp.float32)
    out = out + b2_ref[...].astype(jnp.float32)
    o_ref[...] = out.astype(o_ref.dtype)


def _round_up(v, m):
    return ((v + m - 1) // m) * m


def _vmem_cap_bytes():
    # Generation-aware VMEM cap: leave headroom for compiler scratch/semaphores.
    #   v5e / v6e: 128 MiB physical -> cap ~100 MiB
    #   v7x      :  64 MiB physical -> cap ~48 MiB
    try:
        phys = int(pltpu.get_tpu_info().vmem_capacity_bytes)
    except Exception:
        return 48 << 20  # safe on every generation
    if phys >= (100 << 20):
        return 100 << 20
    return 48 << 20


@functools.partial(jax.jit, static_argnames=("tile_rows",))
def conv_mlp(x, w1, b1, w2, b2, *, tile_rows=None):
    """x: [b, h, w, c] -> out: [b, h, w, c]  (same semantics as ConvMlp.forward).

    w1: (c, hid)  == conv1 weight [hid, c, 1, 1] reshaped;  b1: (hid,)
    w2: (hid, c)  == conv2 weight [c, hid, 1, 1] reshaped;  b2: (c,)
    """
    b, h, w, c = x.shape
    hid = w1.shape[1]
    n = b * h * w
    itm = x.dtype.itemsize
    witm = w1.dtype.itemsize

    block_diag = (128 % c == 0)
    if block_diag:
        # Channels-into-lanes: a 128-lane row = P pixels x c channels, which is
        # exactly the contiguous flat view of x -- no transposes either way.
        P = 128 // c
        lanes = 128
        hid_lanes = P * hid
        w1_k = jnp.kron(jnp.eye(P, dtype=w1.dtype), w1)          # (128, P*hid)
        w2_k = jnp.kron(jnp.eye(P, dtype=w2.dtype), w2)          # (P*hid, 128)
        b1_k = jnp.tile(b1, P).reshape(1, hid_lanes)
        b2_k = jnp.tile(b2, P).reshape(1, lanes)
        total = n * c
        padded = _round_up(total, lanes * 8)    # keep rows a multiple of 8
        flat = x.reshape(total)
        if padded != total:
            flat = jnp.pad(flat, (0, padded - total))
        rows = padded // lanes
        x2 = flat.reshape(rows, lanes)
    else:
        # Fallback (c does not divide 128): pixels on sublanes, channels on
        # lanes.  Still transpose-free; stores are lane-masked but correct.
        P = 1
        lanes = c
        hid_lanes = hid
        w1_k, w2_k = w1, w2
        b1_k = b1.reshape(1, hid)
        b2_k = b2.reshape(1, c)
        total = n * c
        padded = total
        rows = n
        x2 = x.reshape(n, c)

    # ---- pixel-row tile selection ------------------------------------------
    row_bytes = lanes * itm
    if tile_rows is None:
        tile_rows = max(1024, (1 << 20) // max(1, row_bytes))   # ~1 MiB / tile
    tile_rows = _round_up(max(8, int(tile_rows)), 8)

    # Clamp the tile by the per-TC VMEM budget: double-buffered in/out tiles
    # + f32 intermediates + (sublane-padded) weights + 16 MiB headroom.
    cap = _vmem_cap_bytes()
    wgt_bytes = 2 * (2 * lanes * hid_lanes + 8 * (hid_lanes + lanes)) * witm
    per_row = 4 * lanes * itm + 3 * hid_lanes * 4
    budget = max(per_row * 8, cap - (16 << 20) - wgt_bytes)
    max_tile = max(8, (budget // per_row) // 8 * 8)
    tile_rows = min(tile_rows, max_tile)

    # Prefer >= 4 grid steps on large inputs (v7x megacore sharding + in/out
    # pipelining) without shrinking any tile below ~512 KiB.
    min_tile = _round_up(max(8, (512 << 10) // max(1, row_bytes)), 8)
    if rows >= 4 * min_tile:
        tile_rows = min(tile_rows, max(min_tile, _round_up(pl.cdiv(rows, 4), 8)))

    if tile_rows >= rows:
        tile_rows = rows                 # single full-extent block (always legal)
    grid_rows = pl.cdiv(rows, tile_rows)

    vmem_needed = (2 * 2 * tile_rows * lanes * itm      # x/out tiles, double-buffered
                   + wgt_bytes                           # resident weights + biases
                   + 3 * tile_rows * hid_lanes * 4)      # f32 h + GELU temporaries
    vmem_limit = int(max(min(vmem_needed + (16 << 20), cap), 32 << 20))

    out2 = pl.pallas_call(
        _convmlp_kernel,
        out_shape=jax.ShapeDtypeStruct((rows, lanes), x.dtype),
        grid_spec=pltpu.PrefetchScalarGridSpec(
            num_scalar_prefetch=0,
            grid=(grid_rows,),
            in_specs=[
                pl.BlockSpec((tile_rows, lanes), lambda i: (i, 0)),   # x rows
                pl.BlockSpec((lanes, hid_lanes), lambda i: (0, 0)),   # W1 (resident)
                pl.BlockSpec((1, hid_lanes), lambda i: (0, 0)),       # b1
                pl.BlockSpec((hid_lanes, lanes), lambda i: (0, 0)),   # W2 (resident)
                pl.BlockSpec((1, lanes), lambda i: (0, 0)),           # b2
            ],
            out_specs=pl.BlockSpec((tile_rows, lanes), lambda i: (i, 0)),
        ),
        compiler_params=pltpu.CompilerParams(
            dimension_semantics=("parallel",),   # independent row tiles -> megacore
            vmem_limit_bytes=vmem_limit,
        ),
    )(x2, w1_k, b1_k, w2_k, b2_k)

    if block_diag:
        out_flat = out2.reshape(rows * lanes)
        if padded != total:
            out_flat = out_flat[:total]
        return out_flat.reshape(b, h, w, c)
    return out2.reshape(b, h, w, c)


def _reference(x, w1, b1, w2, b2):
    # Pure-JAX reference for the ConvMlp forward (1x1 convs == channel matmuls).
    h = jnp.einsum("bhwc,cd->bhwd", x, w1) + b1
    h = 0.5 * h * (1.0 + jax.lax.erf(h / jnp.sqrt(2.0)))
    return jnp.einsum("bhwd,dc->bhwc", h, w2) + b2


if __name__ == "__main__":
    # Shapes implied by ConvMlp(dim=4, mult=4) on x: [b, h, w, c] = [2, 16, 16, 4]
    dim, mult = 4, 4
    hidden = dim * mult

    key = jax.random.PRNGKey(0)
    kx, k1, k2, k3, k4, kx2 = jax.random.split(key, 6)

    # Conv2d 1x1 weights flattened to matmul form.
    w1 = jax.random.normal(k1, (dim, hidden), dtype=jnp.float32) * 0.1   # [hid, dim, 1, 1] -> (dim, hid)
    b1 = jax.random.normal(k2, (hidden,), dtype=jnp.float32) * 0.1
    w2 = jax.random.normal(k3, (hidden, dim), dtype=jnp.float32) * 0.1   # [dim, hid, 1, 1] -> (hid, dim)
    b2 = jax.random.normal(k4, (dim,), dtype=jnp.float32) * 0.1

    # Main case: single grid step, fully lane-dense, no padding (2048 % 1024 == 0).
    x = jax.random.normal(kx, (2, 16, 16, dim), dtype=jnp.float32)
    ref = _reference(x, w1, b1, w2, b2)
    out = jax.block_until_ready(conv_mlp(x, w1, b1, w2, b2))
    assert out.shape == x.shape
    assert jnp.allclose(out, ref, atol=1e-4, rtol=1e-4), "mismatch vs reference"

    # Multi-step grid with a partial tail block: 3*16*16*4 = 3072 elems -> 24
    # rows of 128; tile_rows=16 -> grid=2 with a masked 8-row tail block.
    x3 = jax.random.normal(kx2, (3, 16, 16, dim), dtype=jnp.float32)
    ref3 = _reference(x3, w1, b1, w2, b2)
    out3 = jax.block_until_ready(conv_mlp(x3, w1, b1, w2, b2, tile_rows=16))
    assert jnp.allclose(out3, ref3, atol=1e-4, rtol=1e-4), "mismatch (partial tile)"

    # Flat-padding path: 1*10*10*4 = 400 elems -> padded to 1024 (8 rows),
    # padded garbage rows computed but sliced off (rows are independent).
    x4 = jax.random.normal(kx, (1, 10, 10, dim), dtype=jnp.float32)
    ref4 = _reference(x4, w1, b1, w2, b2)
    out4 = jax.block_until_ready(conv_mlp(x4, w1, b1, w2, b2))
    assert jnp.allclose(out4, ref4, atol=1e-4, rtol=1e-4), "mismatch (padded flat)"

    print("KERNEL_OK")
</pallas_src>

<mosaic_0001>
module attributes {stable_mosaic.version = 11 : i64} {
  func.func @_convmlp_kernel(%arg0: i32, %arg1: memref<16x128xf32, #tpu.memory_space<vmem>>, %arg2: memref<128x512xf32, #tpu.memory_space<vmem>>, %arg3: memref<1x512xf32, #tpu.memory_space<vmem>>, %arg4: memref<512x128xf32, #tpu.memory_space<vmem>>, %arg5: memref<1x128xf32, #tpu.memory_space<vmem>>, %arg6: memref<16x128xf32, #tpu.memory_space<vmem>>) attributes {dimension_semantics = [#tpu.dimension_semantics<parallel>], iteration_bounds = array<i64: 1>, scalar_prefetch = 0 : i64, scratch_operands = 0 : i64, tpu.core_type = #tpu.core_type<tc>, window_params = [{transform_indices = @transform_0, window_bounds = array<i64: 16, 128>}, {pipeline_mode = #tpu.pipeline_mode<synchronous>, transform_indices = @transform_1, window_bounds = array<i64: 128, 512>}, {pipeline_mode = #tpu.pipeline_mode<synchronous>, transform_indices = @transform_2, window_bounds = array<i64: 1, 512>}, {pipeline_mode = #tpu.pipeline_mode<synchronous>, transform_indices = @transform_3, window_bounds = array<i64: 512, 128>}, {pipeline_mode = #tpu.pipeline_mode<synchronous>, transform_indices = @transform_4, window_bounds = array<i64: 1, 128>}, {transform_indices = @transform_5, window_bounds = array<i64: 16, 128>}]} {
    %c0 = arith.constant 0 : index
    %c0_0 = arith.constant 0 : index
    %0 = vector.load %arg1[%c0, %c0_0] : memref<16x128xf32, #tpu.memory_space<vmem>>, vector<16x128xf32>
    %c0_1 = arith.constant 0 : index
    %c0_2 = arith.constant 0 : index
    %1 = vector.load %arg2[%c0_1, %c0_2] : memref<128x512xf32, #tpu.memory_space<vmem>>, vector<128x512xf32>
    %cst = arith.constant dense<0.000000e+00> : vector<16x512xf32>
    %2 = tpu.matmul %0, %1, %cst {dimension_numbers = #tpu.dot_dimension_numbers<[1], [0], [0], [1], [0, 0, 1, 1], [], []>} : vector<16x128xf32>, vector<128x512xf32>, vector<16x512xf32> -> vector<16x512xf32>
    %c0_3 = arith.constant 0 : index
    %c0_4 = arith.constant 0 : index
    %3 = vector.load %arg3[%c0_3, %c0_4] : memref<1x512xf32, #tpu.memory_space<vmem>>, vector<1x512xf32>
    %4 = vector.broadcast %3 : vector<1x512xf32> to vector<16x512xf32>
    %5 = arith.addf %2, %4 : vector<16x512xf32>
    %cst_5 = arith.constant 5.000000e-01 : f32
    %6 = vector.broadcast %cst_5 : f32 to vector<16x512xf32>
    %7 = arith.mulf %6, %5 : vector<16x512xf32>
    %cst_6 = arith.constant 0.707106769 : f32
    %8 = vector.broadcast %cst_6 : f32 to vector<16x512xf32>
    %9 = arith.mulf %5, %8 : vector<16x512xf32>
    %10 = math.erf %9 : vector<16x512xf32>
    %cst_7 = arith.constant 1.000000e+00 : f32
    %11 = vector.broadcast %cst_7 : f32 to vector<16x512xf32>
    %12 = arith.addf %11, %10 : vector<16x512xf32>
    %13 = arith.mulf %7, %12 : vector<16x512xf32>
    %c0_8 = arith.constant 0 : index
    %c0_9 = arith.constant 0 : index
    %14 = vector.load %arg4[%c0_8, %c0_9] : memref<512x128xf32, #tpu.memory_space<vmem>>, vector<512x128xf32>
    %cst_10 = arith.constant dense<0.000000e+00> : vector<16x128xf32>
    %15 = tpu.matmul %13, %14, %cst_10 {dimension_numbers = #tpu.dot_dimension_numbers<[1], [0], [0], [1], [0, 0, 1, 1], [], []>} : vector<16x512xf32>, vector<512x128xf32>, vector<16x128xf32> -> vector<16x128xf32>
    %c0_11 = arith.constant 0 : index
    %c0_12 = arith.constant 0 : index
    %16 = vector.load %arg5[%c0_11, %c0_12] : memref<1x128xf32, #tpu.memory_space<vmem>>, vector<1x128xf32>
    %17 = vector.broadcast %16 : vector<1x128xf32> to vector<16x128xf32>
    %18 = arith.addf %15, %17 : vector<16x128xf32>
    %c0_13 = arith.constant 0 : index
    %c0_14 = arith.constant 0 : index
    %19 = vector.load %arg6[%c0_13, %c0_14] : memref<16x128xf32, #tpu.memory_space<vmem>>, vector<16x128xf32>
    tpu.vector_store %arg6[%c0_13, %c0_14], %18 {strides = array<i32>} : memref<16x128xf32, #tpu.memory_space<vmem>>, vector<16x128xf32>,
    return
  }
  func.func @transform_0(%arg0: i32) -> (i32, i32) {
    %c0_i32 = arith.constant 0 : i32
    %c0_i32_0 = arith.constant 0 : i32
    return %arg0, %c0_i32 : i32, i32
  }
  func.func @transform_1(%arg0: i32) -> (i32, i32) {
    %c0_i32 = arith.constant 0 : i32
    %c0_i32_0 = arith.constant 0 : i32
    %c0_i32_1 = arith.constant 0 : i32
    return %c0_i32, %c0_i32_0 : i32, i32
  }
  func.func @transform_2(%arg0: i32) -> (i32, i32) {
    %c0_i32 = arith.constant 0 : i32
    %c0_i32_0 = arith.constant 0 : i32
    %c0_i32_1 = arith.constant 0 : i32
    return %c0_i32, %c0_i32_0 : i32, i32
  }
  func.func @transform_3(%arg0: i32) -> (i32, i32) {
    %c0_i32 = arith.constant 0 : i32
    %c0_i32_0 = arith.constant 0 : i32
    %c0_i32_1 = arith.constant 0 : i32
    return %c0_i32, %c0_i32_0 : i32, i32
  }
  func.func @transform_4(%arg0: i32) -> (i32, i32) {
    %c0_i32 = arith.constant 0 : i32
    %c0_i32_0 = arith.constant 0 : i32
    %c0_i32_1 = arith.constant 0 : i32
    return %c0_i32, %c0_i32_0 : i32, i32
  }
  func.func @transform_5(%arg0: i32) -> (i32, i32) {
    %c0_i32 = arith.constant 0 : i32
    %c0_i32_0 = arith.constant 0 : i32
    return %arg0, %c0_i32 : i32, i32
  }
}

</mosaic_0001>

<llo_original>
// kernel: tile.13
$region0: #{tile.13}
  #allocation0 [shape = 's32[1]{0}', space=sflag, size = 0x4, scoped, tag = 'scoped memory for tile.13']
  %s0 = inlined_call_operand.vmem [shape: f32[16], index: 0, kind: input, shape index: {}]
  %s1 = inlined_call_operand.vmem [shape: f32[32,16], index: 1, kind: output, shape index: {}]
  // Predicated region
  $region2: #{tile.13} parent=0 // pred_check
    _
  $region3: #{tile.13} parent=0 // pred_check_branch
    %3 = sbr.rel (0) target = $region5
  $region4: #{tile.13} parent=0 // pred_region
    _
  $region5: #{tile.13} parent=0 // pred_fallthru
    _
  %v4 = vld [vmem:[%s0] ss:$0 sm:$0xff]
  %5 = vst [vmem:[%s1] sm:$0xff] %v4
  %s6 = scalar_lea.vmem %s1, 8
  %7 = vst [vmem:[%s6] sm:$0xff] %v4
  %s8 = scalar_lea.vmem %s1, 16
  %9 = vst [vmem:[%s8] sm:$0xff] %v4
  %s10 = scalar_lea.vmem %s1, 24
  %11 = vst [vmem:[%s10] sm:$0xff] %v4

// kernel: tile.14
$region0: #{tile.14}
  %s0 = inlined_call_operand.vmem [shape: f32[32,16], index: 0, kind: input, shape index: {}]
  %s1 = inlined_call_operand.vmem [shape: f32[1,512], index: 1, kind: output, shape index: {}]
  $region1: #{tile.14} parent=0
    #allocation0 [shape = 'u8[16384]{0}', space=vmem, size = 0x4000, scoped, tag = 'scoped mem for output reshape']
    %v2 = vld [vmem:[%s0] ss:$8 sm:$0xf]
    %vm3 = vcmask 130048
    %4 = vst.msk [vmem:[#allocation0] ss:$8 sm:$0xf] %vm3, %v2
    %s5 = scalar_lea.vmem %s0, 7
    %v6 = vld [vmem:[%s5] ss:$8 sm:$0xf]
    %7 = vrot.lane.b32.xlu0 %v6, 112
    %v8 = vpop.permute.xlu0 %7
    %vm9 = vcmask 1048448
    %10 = vst.msk [vmem:[#allocation0] ss:$8 sm:$0xf] %vm9, %v8
    %s11 = scalar_lea.vmem %s0, 6
    %v12 = vld [vmem:[%s11] ss:$8 sm:$0xf]
    %13 = vrot.lane.b32.xlu0 %v12, 96
    %v14 = vpop.permute.xlu0 %13
    %vm15 = vcmask 917248
    %16 = vst.msk [vmem:[#allocation0] ss:$8 sm:$0xf] %vm15, %v14
    %s17 = scalar_lea.vmem %s0, 5
    %v18 = vld [vmem:[%s17] ss:$8 sm:$0xf]
    %19 = vrot.lane.b32.xlu0 %v18, 80
    %v20 = vpop.permute.xlu0 %19
    %vm21 = vcmask 786048
    %22 = vst.msk [vmem:[#allocation0] ss:$8 sm:$0xf] %vm21, %v20
    %s23 = scalar_lea.vmem %s0, 4
    %v24 = vld [vmem:[%s23] ss:$8 sm:$0xf]
    %25 = vrot.lane.b32.xlu0 %v24, 64
    %v26 = vpop.permute.xlu0 %25
    %vm27 = vcmask 654848
    %28 = vst.msk [vmem:[#allocation0] ss:$8 sm:$0xf] %vm27, %v26
    %s29 = scalar_lea.vmem %s0, 3
    %v30 = vld [vmem:[%s29] ss:$8 sm:$0xf]
    %31 = vrot.lane.b32.xlu0 %v30, 48
    %v32 = vpop.permute.xlu0 %31
    %vm33 = vcmask 523648
    %34 = vst.msk [vmem:[#allocation0] ss:$8 sm:$0xf] %vm33, %v32
    %s35 = scalar_lea.vmem %s0, 2
    %v36 = vld [vmem:[%s35] ss:$8 sm:$0xf]
    %37 = vrot.lane.b32.xlu0 %v36, 32
    %v38 = vpop.permute.xlu0 %37
    %vm39 = vcmask 392448
    %40 = vst.msk [vmem:[#allocation0] ss:$8 sm:$0xf] %vm39, %v38
    %s41 = scalar_lea.vmem %s0, 1
    %v42 = vld [vmem:[%s41] ss:$8 sm:$0xf]
    %43 = vrot.lane.b32.xlu0 %v42, 16
    %v44 = vpop.permute.xlu0 %43
    %vm45 = vcmask 261248
    %46 = vst.msk [vmem:[#allocation0] ss:$8 sm:$0xf] %vm45, %v44
    %s48 = sshllo.u32 0, 1
    %v50 = vld [vmem:[#allocation0] sm:%s48]
    %s51 = sshllo.u32 0, 1
    %52 = vst [vmem:[%s1] sm:%s51] %v50
    %s53 = scalar_lea.vmem [#allocation0], 8
    %v54 = vld [vmem:[%s53] sm:%s48]
    %s55 = sshllo.u32 0, 1
    %s56 = scalar_lea.vmem %s1, 1
    %57 = vst [vmem:[%s56] sm:%s55] %v54
    %s58 = scalar_lea.vmem [#allocation0], 16
    %v59 = vld [vmem:[%s58] sm:%s48]
    %s60 = sshllo.u32 0, 1
    %s61 = smul.addr 1, 2
    %s62 = scalar_lea.vmem %s1, %s61
    %63 = vst [vmem:[%s62] sm:%s60] %v59
    %s64 = scalar_lea.vmem [#allocation0], 24
    %v65 = vld [vmem:[%s64] sm:%s48]
    %s66 = sshllo.u32 0, 1
    %s67 = smul.addr 1, 3
    %s68 = scalar_lea.vmem %s1, %s67
    %69 = vst [vmem:[%s68] sm:%s66] %v65

// kernel: tile.18
$region0: #{tile.18}
  #allocation0 [shape = 's32[1]{0}', space=sflag, size = 0x4, scoped, tag = 'scoped memory for tile.18']
  %s0 = inlined_call_operand.vmem [shape: f32[4], index: 0, kind: input, shape index: {}]
  %s1 = inlined_call_operand.vmem [shape: f32[32,4], index: 1, kind: output, shape index: {}]
  // Predicated region
  $region2: #{tile.18} parent=0 // pred_check
    _
  $region3: #{tile.18} parent=0 // pred_check_branch
    %3 = sbr.rel (0) target = $region5
  $region4: #{tile.18} parent=0 // pred_region
    _
  $region5: #{tile.18} parent=0 // pred_fallthru
    _
  %v4 = vld [vmem:[%s0] ss:$0 sm:$0xff]
  %5 = vst [vmem:[%s1] sm:$0xff] %v4
  %s6 = scalar_lea.vmem %s1, 8
  %7 = vst [vmem:[%s6] sm:$0xff] %v4
  %s8 = scalar_lea.vmem %s1, 16
  %9 = vst [vmem:[%s8] sm:$0xff] %v4
  %s10 = scalar_lea.vmem %s1, 24
  %11 = vst [vmem:[%s10] sm:$0xff] %v4

// kernel: tile.19
$region0: #{tile.19}
  %s0 = inlined_call_operand.vmem [shape: f32[32,4], index: 0, kind: input, shape index: {}]
  %s1 = inlined_call_operand.vmem [shape: f32[1,128], index: 1, kind: output, shape index: {}]
  $region1: #{tile.19} parent=0
    #allocation0 [shape = 'u8[4096]{0}', space=vmem, size = 0x1000, scoped, tag = 'scoped mem for output reshape']
    %v2 = vld [vmem:[%s0] sm:$0x1]
    %vm3 = vcmask 31744
    %4 = vst.msk [vmem:[#allocation0] sm:$0x1] %vm3, %v2
    %s5 = scalar_lea.vmem %s0, 31
    %v6 = vld [vmem:[%s5] sm:$0x1]
    %7 = vrot.lane.b32.xlu0 %v6, 124
    %v8 = vpop.permute.xlu0 %7
    %vm9 = vcmask 1048544
    %10 = vst.msk [vmem:[#allocation0] sm:$0x1] %vm9, %v8
    %s11 = scalar_lea.vmem %s0, 30
    %v12 = vld [vmem:[%s11] sm:$0x1]
    %13 = vrot.lane.b32.xlu0 %v12, 120
    %v14 = vpop.permute.xlu0 %13
    %vm15 = vcmask 1015744
    %16 = vst.msk [vmem:[#allocation0] sm:$0x1] %vm15, %v14
    %s17 = scalar_lea.vmem %s0, 29
    %v18 = vld [vmem:[%s17] sm:$0x1]
    %19 = vrot.lane.b32.xlu0 %v18, 116
    %v20 = vpop.permute.xlu0 %19
    %vm21 = vcmask 982944
    %22 = vst.msk [vmem:[#allocation0] sm:$0x1] %vm21, %v20
    %s23 = scalar_lea.vmem %s0, 28
    %v24 = vld [vmem:[%s23] sm:$0x1]
    %25 = vrot.lane.b32.xlu0 %v24, 112
    %v26 = vpop.permute.xlu0 %25
    %vm27 = vcmask 950144
    %28 = vst.msk [vmem:[#allocation0] sm:$0x1] %vm27, %v26
    %s29 = scalar_lea.vmem %s0, 27
    %v30 = vld [vmem:[%s29] sm:$0x1]
    %31 = vrot.lane.b32.xlu0 %v30, 108
    %v32 = vpop.permute.xlu0 %31
    %vm33 = vcmask 917344
    %34 = vst.msk [vmem:[#allocation0] sm:$0x1] %vm33, %v32
    %s35 = scalar_lea.vmem %s0, 26
    %v36 = vld [vmem:[%s35] sm:$0x1]
    %37 = vrot.lane.b32.xlu0 %v36, 104
    %v38 = vpop.permute.xlu0 %37
    %vm39 = vcmask 884544
    %40 = vst.msk [vmem:[#allocation0] sm:$0x1] %vm39, %v38
    %s41 = scalar_lea.vmem %s0, 25
    %v42 = vld [vmem:[%s41] sm:$0x1]
    %43 = vrot.lane.b32.xlu0 %v42, 100
    %v44 = vpop.permute.xlu0 %43
    %vm45 = vcmask 851744
    %46 = vst.msk [vmem:[#allocation0] sm:$0x1] %vm45, %v44
    %s47 = scalar_lea.vmem %s0, 24
    %v48 = vld [vmem:[%s47] sm:$0x1]
    %49 = vrot.lane.b32.xlu0 %v48, 96
    %v50 = vpop.permute.xlu0 %49
    %vm51 = vcmask 818944
    %52 = vst.msk [vmem:[#allocation0] sm:$0x1] %vm51, %v50
    %s53 = scalar_lea.vmem %s0, 23
    %v54 = vld [vmem:[%s53] sm:$0x1]
    %55 = vrot.lane.b32.xlu0 %v54, 92
    %v56 = vpop.permute.xlu0 %55
    %vm57 = vcmask 786144
    %58 = vst.msk [vmem:[#allocation0] sm:$0x1] %vm57, %v56
    %s59 = scalar_lea.vmem %s0, 22
    %v60 = vld [vmem:[%s59] sm:$0x1]
    %61 = vrot.lane.b32.xlu0 %v60, 88
    %v62 = vpop.permute.xlu0 %61
    %vm63 = vcmask 753344
    %64 = vst.msk [vmem:[#allocation0] sm:$0x1] %vm63, %v62
    %s65 = scalar_lea.vmem %s0, 21
    %v66 = vld [vmem:[%s65] sm:$0x1]
    %67 = vrot.lane.b32.xlu0 %v66, 84
    %v68 = vpop.permute.xlu0 %67
    %vm69 = vcmask 720544
    %70 = vst.msk [vmem:[#allocation0] sm:$0x1] %vm69, %v68
    %s71 = scalar_lea.vmem %s0, 20
    %v72 = vld [vmem:[%s71] sm:$0x1]
    %73 = vrot.lane.b32.xlu0 %v72, 80
    %v74 = vpop.permute.xlu0 %73
    %vm75 = vcmask 687744
    %76 = vst.msk [vmem:[#allocation0] sm:$0x1] %vm75, %v74
    %s77 = scalar_lea.vmem %s0, 19
    %v78 = vld [vmem:[%s77] sm:$0x1]
    %79 = vrot.lane.b32.xlu0 %v78, 76
    %v80 = vpop.permute.xlu0 %79
    %vm81 = vcmask 654944
    %82 = vst.msk [vmem:[#allocation0] sm:$0x1] %vm81, %v80
    %s83 = scalar_lea.vmem %s0, 18
    %v84 = vld [vmem:[%s83] sm:$0x1]
    %85 = vrot.lane.b32.xlu0 %v84, 72
    %v86 = vpop.permute.xlu0 %85
    %vm87 = vcmask 622144
    %88 = vst.msk [vmem:[#allocation0] sm:$0x1] %vm87, %v86
    %s89 = scalar_lea.vmem %s0, 17
    %v90 = vld [vmem:[%s89] sm:$0x1]
    %91 = vrot.lane.b32.xlu0 %v90, 68
    %v92 = vpop.permute.xlu0 %91
    %vm93 = vcmask 589344
    %94 = vst.msk [vmem:[#allocation0] sm:$0x1] %vm93, %v92
    %s95 = scalar_lea.vmem %s0, 16
    %v96 = vld [vmem:[%s95] sm:$0x1]
    %97 = vrot.lane.b32.xlu0 %v96, 64
    %v98 = vpop.permute.xlu0 %97
    %vm99 = vcmask 556544
    %100 = vst.msk [vmem:[#allocation0] sm:$0x1] %vm99, %v98
    %s101 = scalar_lea.vmem %s0, 15
    %v102 = vld [vmem:[%s101] sm:$0x1]
    %103 = vrot.lane.b32.xlu0 %v102, 60
    %v104 = vpop.permute.xlu0 %103
    %vm105 = vcmask 523744
    %106 = vst.msk [vmem:[#allocation0] sm:$0x1] %vm105, %v104
    %s107 = scalar_lea.vmem %s0, 14
    %v108 = vld [vmem:[%s107] sm:$0x1]
    %109 = vrot.lane.b32.xlu0 %v108, 56
    %v110 = vpop.permute.xlu0 %109
    %vm111 = vcmask 490944
    %112 = vst.msk [vmem:[#allocation0] sm:$0x1] %vm111, %v110
    %s113 = scalar_lea.vmem %s0, 13
    %v114 = vld [vmem:[%s113] sm:$0x1]
    %115 = vrot.lane.b32.xlu0 %v114, 52
    %v116 = vpop.permute.xlu0 %115
    %vm117 = vcmask 458144
    %118 = vst.msk [vmem:[#allocation0] sm:$0x1] %vm117, %v116
    %s119 = scalar_lea.vmem %s0, 12
    %v120 = vld [vmem:[%s119] sm:$0x1]
    %121 = vrot.lane.b32.xlu0 %v120, 48
    %v122 = vpop.permute.xlu0 %121
    %vm123 = vcmask 425344
    %124 = vst.msk [vmem:[#allocation0] sm:$0x1] %vm123, %v122
    %s125 = scalar_lea.vmem %s0, 11
    %v126 = vld [vmem:[%s125] sm:$0x1]
    %127 = vrot.lane.b32.xlu0 %v126, 44
    %v128 = vpop.permute.xlu0 %127
    %vm129 = vcmask 392544
    %130 = vst.msk [vmem:[#allocation0] sm:$0x1] %vm129, %v128
    %s131 = scalar_lea.vmem %s0, 10
    %v132 = vld [vmem:[%s131] sm:$0x1]
    %133 = vrot.lane.b32.xlu0 %v132, 40
    %v134 = vpop.permute.xlu0 %133
    %vm135 = vcmask 359744
    %136 = vst.msk [vmem:[#allocation0] sm:$0x1] %vm135, %v134
    %s137 = scalar_lea.vmem %s0, 9
    %v138 = vld [vmem:[%s137] sm:$0x1]
    %139 = vrot.lane.b32.xlu0 %v138, 36
    %v140 = vpop.permute.xlu0 %139
    %vm141 = vcmask 326944
    %142 = vst.msk [vmem:[#allocation0] sm:$0x1] %vm141, %v140
    %s143 = scalar_lea.vmem %s0, 8
    %v144 = vld [vmem:[%s143] sm:$0x1]
    %145 = vrot.lane.b32.xlu0 %v144, 32
    %v146 = vpop.permute.xlu0 %145
    %vm147 = vcmask 294144
    %148 = vst.msk [vmem:[#allocation0] sm:$0x1] %vm147, %v146
    %s149 = scalar_lea.vmem %s0, 7
    %v150 = vld [vmem:[%s149] sm:$0x1]
    %151 = vrot.lane.b32.xlu0 %v150, 28
    %v152 = vpop.permute.xlu0 %151
    %vm153 = vcmask 261344
    %154 = vst.msk [vmem:[#allocation0] sm:$0x1] %vm153, %v152
    %s155 = scalar_lea.vmem %s0, 6
    %v156 = vld [vmem:[%s155] sm:$0x1]
    %157 = vrot.lane.b32.xlu0 %v156, 24
    %v158 = vpop.permute.xlu0 %157
    %vm159 = vcmask 228544
    %160 = vst.msk [vmem:[#allocation0] sm:$0x1] %vm159, %v158
    %s161 = scalar_lea.vmem %s0, 5
    %v162 = vld [vmem:[%s161] sm:$0x1]
    %163 = vrot.lane.b32.xlu0 %v162, 20
    %v164 = vpop.permute.xlu0 %163
    %vm165 = vcmask 195744
    %166 = vst.msk [vmem:[#allocation0] sm:$0x1] %vm165, %v164
    %s167 = scalar_lea.vmem %s0, 4
    %v168 = vld [vmem:[%s167] sm:$0x1]
    %169 = vrot.lane.b32.xlu0 %v168, 16
    %v170 = vpop.permute.xlu0 %169
    %vm171 = vcmask 162944
    %172 = vst.msk [vmem:[#allocation0] sm:$0x1] %vm171, %v170
    %s173 = scalar_lea.vmem %s0, 3
    %v174 = vld [vmem:[%s173] sm:$0x1]
    %175 = vrot.lane.b32.xlu0 %v174, 12
    %v176 = vpop.permute.xlu0 %175
    %vm177 = vcmask 130144
    %178 = vst.msk [vmem:[#allocation0] sm:$0x1] %vm177, %v176
    %s179 = scalar_lea.vmem %s0, 2
    %v180 = vld [vmem:[%s179] sm:$0x1]
    %181 = vrot.lane.b32.xlu0 %v180, 8
    %v182 = vpop.permute.xlu0 %181
    %vm183 = vcmask 97344
    %184 = vst.msk [vmem:[#allocation0] sm:$0x1] %vm183, %v182
    %s185 = scalar_lea.vmem %s0, 1
    %v186 = vld [vmem:[%s185] sm:$0x1]
    %187 = vrot.lane.b32.xlu0 %v186, 4
    %v188 = vpop.permute.xlu0 %187
    %vm189 = vcmask 64544
    %190 = vst.msk [vmem:[#allocation0] sm:$0x1] %vm189, %v188
    %s192 = sshllo.u32 0, 1
    %v194 = vld [vmem:[#allocation0] sm:%s192]
    %s195 = sshllo.u32 0, 1
    %196 = vst [vmem:[%s1] sm:%s195] %v194

// kernel: conv_mlp.1
$region0: #{conv_mlp.1}
  #allocation0 [shape = 'u32[]', space=smem, size = 0x4, offset = 0x4, fixed_abs, tag = 'smem constant byte address 0x4 - core index']
  #allocation1 [shape = 'u32[144,128]{1,0:T(1,128)}', space=vmem, size = 0x12000, scoped, tag = 'internal scratch']
  %s0 = inlined_call_operand.vmem [shape: f32[16,128], index: 0, kind: input, shape index: {}]
  %s1 = inlined_call_operand.vmem [shape: f32[128,512], index: 1, kind: input, shape index: {}]
  %s2 = inlined_call_operand.vmem [shape: f32[1,512], index: 2, kind: input, shape index: {}]
  %s3 = inlined_call_operand.vmem [shape: f32[512,128], index: 3, kind: input, shape index: {}]
  %s4 = inlined_call_operand.vmem [shape: f32[1,128], index: 4, kind: input, shape index: {}]
  %s5 = inlined_call_operand.vmem [shape: f32[16,128], index: 5, kind: output, shape index: {}]
  %s6 = sld [smem:[#allocation0]]
  $region30: #{conv_mlp.1} parent=0
    _
  %s8 = ssub.s32 1, %s6
  %s9 = scalar_select 0, %s8, %s6
  // Predicated region
  $region2: #{conv_mlp.1} parent=0 // pred_check
    _
  $region3: #{conv_mlp.1} parent=0 // pred_check_branch
    %11 = sbr.rel (0) target = $region5
  $region4: #{conv_mlp.1} parent=0 // pred_region
    _
  $region5: #{conv_mlp.1} parent=0 // pred_fallthru
    _
  // Predicated region
  $region6: #{conv_mlp.1} parent=0 // pred_check
    _
  $region7: #{conv_mlp.1} parent=0 // pred_check_branch
    %13 = sbr.rel (0) target = $region9
  $region8: #{conv_mlp.1} parent=0 // pred_region
    _
  $region9: #{conv_mlp.1} parent=0 // pred_fallthru
    _
  // Predicated region
  $region10: #{conv_mlp.1} parent=0 // pred_check
    _
  $region11: #{conv_mlp.1} parent=0 // pred_check_branch
    %15 = sbr.rel (0) target = $region13
  $region12: #{conv_mlp.1} parent=0 // pred_region
    _
  $region13: #{conv_mlp.1} parent=0 // pred_fallthru
    _
  // Predicated region
  $region14: #{conv_mlp.1} parent=0 // pred_check
    _
  $region15: #{conv_mlp.1} parent=0 // pred_check_branch
    %17 = sbr.rel (0) target = $region17
  $region16: #{conv_mlp.1} parent=0 // pred_region
    _
  $region17: #{conv_mlp.1} parent=0 // pred_fallthru
    _
  // Predicated region
  $region18: #{conv_mlp.1} parent=0 // pred_check
    _
  $region19: #{conv_mlp.1} parent=0 // pred_check_branch
    %19 = sbr.rel (0) target = $region21
  $region20: #{conv_mlp.1} parent=0 // pred_region
    _
  $region21: #{conv_mlp.1} parent=0 // pred_fallthru
    _
  %v20 = vld [vmem:[%s0] sm:$0xff]
  %v21 = vld [vmem:[%s0 + $0x8] sm:$0xff]
  %v22 = vld [vmem:[%s1] sm:$0xff]
  %v23 = vld [vmem:[%s1 + $0x8] sm:$0xff]
  %v24 = vld [vmem:[%s1 + $0x10] sm:$0xff]
  %v25 = vld [vmem:[%s1 + $0x18] sm:$0xff]
  %v26 = vld [vmem:[%s1 + $0x20] sm:$0xff]
  %v27 = vld [vmem:[%s1 + $0x28] sm:$0xff]
  %v28 = vld [vmem:[%s1 + $0x30] sm:$0xff]
  %v29 = vld [vmem:[%s1 + $0x38] sm:$0xff]
  %v30 = vld [vmem:[%s1 + $0x40] sm:$0xff]
  %v31 = vld [vmem:[%s1 + $0x48] sm:$0xff]
  %v32 = vld [vmem:[%s1 + $0x50] sm:$0xff]
  %v33 = vld [vmem:[%s1 + $0x58] sm:$0xff]
  %v34 = vld [vmem:[%s1 + $0x60] sm:$0xff]
  %v35 = vld [vmem:[%s1 + $0x68] sm:$0xff]
  %v36 = vld [vmem:[%s1 + $0x70] sm:$0xff]
  %v37 = vld [vmem:[%s1 + $0x78] sm:$0xff]
  %v38 = vld [vmem:[%s1 + $0x80] sm:$0xff]
  %v39 = vld [vmem:[%s1 + $0x88] sm:$0xff]
  %v40 = vld [vmem:[%s1 + $0x90] sm:$0xff]
  %v41 = vld [vmem:[%s1 + $0x98] sm:$0xff]
  %v42 = vld [vmem:[%s1 + $0xa0] sm:$0xff]
  %v43 = vld [vmem:[%s1 + $0xa8] sm:$0xff]
  %v44 = vld [vmem:[%s1 + $0xb0] sm:$0xff]
  %v45 = vld [vmem:[%s1 + $0xb8] sm:$0xff]
  %v46 = vld [vmem:[%s1 + $0xc0] sm:$0xff]
  %v47 = vld [vmem:[%s1 + $0xc8] sm:$0xff]
  %v48 = vld [vmem:[%s1 + $0xd0] sm:$0xff]
  %v49 = vld [vmem:[%s1 + $0xd8] sm:$0xff]
  %v50 = vld [vmem:[%s1 + $0xe0] sm:$0xff]
  %v51 = vld [vmem:[%s1 + $0xe8] sm:$0xff]
  %v52 = vld [vmem:[%s1 + $0xf0] sm:$0xff]
  %v53 = vld [vmem:[%s1 + $0xf8] sm:$0xff]
  %v54 = vld [vmem:[%s1 + $0x100] sm:$0xff]
  %v55 = vld [vmem:[%s1 + $0x108] sm:$0xff]
  %v56 = vld [vmem:[%s1 + $0x110] sm:$0xff]
  %v57 = vld [vmem:[%s1 + $0x118] sm:$0xff]
  %v58 = vld [vmem:[%s1 + $0x120] sm:$0xff]
  %v59 = vld [vmem:[%s1 + $0x128] sm:$0xff]
  %v60 = vld [vmem:[%s1 + $0x130] sm:$0xff]
  %v61 = vld [vmem:[%s1 + $0x138] sm:$0xff]
  %v62 = vld [vmem:[%s1 + $0x140] sm:$0xff]
  %v63 = vld [vmem:[%s1 + $0x148] sm:$0xff]
  %v64 = vld [vmem:[%s1 + $0x150] sm:$0xff]
  %v65 = vld [vmem:[%s1 + $0x158] sm:$0xff]
  %v66 = vld [vmem:[%s1 + $0x160] sm:$0xff]
  %v67 = vld [vmem:[%s1 + $0x168] sm:$0xff]
  %v68 = vld [vmem:[%s1 + $0x170] sm:$0xff]
  %v69 = vld [vmem:[%s1 + $0x178] sm:$0xff]
  %v70 = vld [vmem:[%s1 + $0x180] sm:$0xff]
  %v71 = vld [vmem:[%s1 + $0x188] sm:$0xff]
  %v72 = vld [vmem:[%s1 + $0x190] sm:$0xff]
  %v73 = vld [vmem:[%s1 + $0x198] sm:$0xff]
  %v74 = vld [vmem:[%s1 + $0x1a0] sm:$0xff]
  %v75 = vld [vmem:[%s1 + $0x1a8] sm:$0xff]
  %v76 = vld [vmem:[%s1 + $0x1b0] sm:$0xff]
  %v77 = vld [vmem:[%s1 + $0x1b8] sm:$0xff]
  %v78 = vld [vmem:[%s1 + $0x1c0] sm:$0xff]
  %v79 = vld [vmem:[%s1 + $0x1c8] sm:$0xff]
  %v80 = vld [vmem:[%s1 + $0x1d0] sm:$0xff]
  %v81 = vld [vmem:[%s1 + $0x1d8] sm:$0xff]
  %v82 = vld [vmem:[%s1 + $0x1e0] sm:$0xff]
  %v83 = vld [vmem:[%s1 + $0x1e8] sm:$0xff]
  %v84 = vld [vmem:[%s1 + $0x1f0] sm:$0xff]
  %v85 = vld [vmem:[%s1 + $0x1f8] sm:$0xff]
  %v86 = vld [vmem:[%s2] sm:$0xf]
  %v88 = vlaneseq
  %v89 = vshrl.u32 %v88, 7
  %v90 = vsub.s32 0, %v89
  %v91 = vrot.slane %v86, %v90
  %v92 = vlaneseq
  %v93 = vshrl.u32 %v92, 7
  %v94 = vsub.s32 1, %v93
  %v95 = vrot.slane %v86, %v94
  %v96 = vlaneseq
  %v97 = vshrl.u32 %v96, 7
  %v98 = vsub.s32 2, %v97
  %v99 = vrot.slane %v86, %v98
  %v100 = vlaneseq
  %v101 = vshrl.u32 %v100, 7
  %v102 = vsub.s32 3, %v101
  %v103 = vrot.slane %v86, %v102
  %108 = vmatprep.subr.mxu0 %v23
  %109 = vmatpush1.msra.mxu0 %v22
  %110 = vmatprep.subr.mxu0 %v27
  %111 = vmatpush1.msra.mxu0 %v26
  %112 = vmatprep.subr.mxu0 %v31
  %113 = vmatpush1.msra.mxu0 %v30
  %114 = vmatprep.subr.mxu0 %v35
  %115 = vmatpush1.msra.mxu0 %v34
  %116 = vmatprep.subr.mxu0 %v39
  %117 = vmatpush1.msra.mxu0 %v38
  %118 = vmatprep.subr.mxu0 %v43
  %119 = vmatpush1.msra.mxu0 %v42
  %120 = vmatprep.subr.mxu0 %v47
  %121 = vmatpush1.msra.mxu0 %v46
  %122 = vmatprep.subr.mxu0 %v51
  %123 = vmatpush1.msra.mxu0 %v50
  %124 = vmatprep.subr.mxu0 %v55
  %125 = vmatpush1.msra.mxu0 %v54
  %126 = vmatprep.subr.mxu0 %v59
  %127 = vmatpush1.msra.mxu0 %v58
  %128 = vmatprep.subr.mxu0 %v63
  %129 = vmatpush1.msra.mxu0 %v62
  %130 = vmatprep.subr.mxu0 %v67
  %131 = vmatpush1.msra.mxu0 %v66
  %132 = vmatprep.subr.mxu0 %v71
  %133 = vmatpush1.msra.mxu0 %v70
  %134 = vmatprep.subr.mxu0 %v75
  %135 = vmatpush1.msra.mxu0 %v74
  %136 = vmatprep.subr.mxu0 %v79
  %137 = vmatpush1.msra.mxu0 %v78
  %138 = vmatprep.subr.mxu0 %v83
  %139 = vmatpush1.msra.mxu0 %v82
  %140 = vmatprep.subr.mxu0 0.0
  %141 = vmatpush1.msra.mxu0 0.0
  %142 = vmatprep.subr.mxu0 0.0
  %143 = vmatpush1.msra.mxu0 0.0
  %144 = vmatprep.subr.mxu0 0.0
  %145 = vmatpush1.msra.mxu0 0.0
  %146 = vmatprep.subr.mxu0 0.0
  %147 = vmatpush1.msra.mxu0 0.0
  %148 = vmatprep.subr.mxu0 0.0
  %149 = vmatpush1.msra.mxu0 0.0
  %150 = vmatprep.subr.mxu0 0.0
  %151 = vmatpush1.msra.mxu0 0.0
  %152 = vmatprep.subr.mxu0 0.0
  %153 = vmatpush1.msra.mxu0 0.0
  %154 = vmatprep.subr.mxu0 0.0
  %155 = vmatpush1.msra.mxu0 0.0
  %156 = vmatprep.subr.mxu0 0.0
  %157 = vmatpush1.msra.mxu0 0.0
  %158 = vmatprep.subr.mxu0 0.0
  %159 = vmatpush1.msra.mxu0 0.0
  %160 = vmatprep.subr.mxu0 0.0
  %161 = vmatpush1.msra.mxu0 0.0
  %162 = vmatprep.subr.mxu0 0.0
  %163 = vmatpush1.msra.mxu0 0.0
  %164 = vmatprep.subr.mxu0 0.0
  %165 = vmatpush1.msra.mxu0 0.0
  %166 = vmatprep.subr.mxu0 0.0
  %167 = vmatpush1.msra.mxu0 0.0
  %168 = vmatprep.subr.mxu0 0.0
  %169 = vmatpush1.msra.mxu0 0.0
  %170 = vmatprep.subr.mxu0 0.0
  %171 = vmatpush1.msra.mxu0 0.0
  %172 = vmatprep.mubr.f32.mxu0 0.0
  %173 = vmatmul.mubr.f32.gmra.mrb[0].mxu0 %v20
  %v174 = vpop.f32.mrb[0].mxu0
  %v175 = vadd.f32 %v91, %v174
  %v176 = vpop.f32.mrb[0].mxu0
  %v177 = vadd.f32 %v95, %v176
  %178 = vmatprep.mubr.f32.mxu0 0.0
  %179 = vmatmul.mubr.f32.gmra.mrb[0].mxu0 %v21
  %v180 = vpop.f32.mrb[0].mxu0
  %v181 = vadd.f32 %v91, %v180
  %v182 = vpop.f32.mrb[0].mxu0
  %v183 = vadd.f32 %v95, %v182
  %184 = vdwg.mxu0
  %185 = vmatprep.subr.mxu0 %v25
  %186 = vmatpush1.msra.mxu0 %v24
  %187 = vmatprep.subr.mxu0 %v29
  %188 = vmatpush1.msra.mxu0 %v28
  %189 = vmatprep.subr.mxu0 %v33
  %190 = vmatpush1.msra.mxu0 %v32
  %191 = vmatprep.subr.mxu0 %v37
  %192 = vmatpush1.msra.mxu0 %v36
  %193 = vmatprep.subr.mxu0 %v41
  %194 = vmatpush1.msra.mxu0 %v40
  %195 = vmatprep.subr.mxu0 %v45
  %196 = vmatpush1.msra.mxu0 %v44
  %197 = vmatprep.subr.mxu0 %v49
  %198 = vmatpush1.msra.mxu0 %v48
  %199 = vmatprep.subr.mxu0 %v53
  %200 = vmatpush1.msra.mxu0 %v52
  %201 = vmatprep.subr.mxu0 %v57
  %202 = vmatpush1.msra.mxu0 %v56
  %203 = vmatprep.subr.mxu0 %v61
  %204 = vmatpush1.msra.mxu0 %v60
  %205 = vmatprep.subr.mxu0 %v65
  %206 = vmatpush1.msra.mxu0 %v64
  %207 = vmatprep.subr.mxu0 %v69
  %208 = vmatpush1.msra.mxu0 %v68
  %209 = vmatprep.subr.mxu0 %v73
  %210 = vmatpush1.msra.mxu0 %v72
  %211 = vmatprep.subr.mxu0 %v77
  %212 = vmatpush1.msra.mxu0 %v76
  %213 = vmatprep.subr.mxu0 %v81
  %214 = vmatpush1.msra.mxu0 %v80
  %215 = vmatprep.subr.mxu0 %v85
  %216 = vmatpush1.msra.mxu0 %v84
  %217 = vmatprep.subr.mxu0 0.0
  %218 = vmatpush1.msra.mxu0 0.0
  %219 = vmatprep.subr.mxu0 0.0
  %220 = vmatpush1.msra.mxu0 0.0
  %221 = vmatprep.subr.mxu0 0.0
  %222 = vmatpush1.msra.mxu0 0.0
  %223 = vmatprep.subr.mxu0 0.0
  %224 = vmatpush1.msra.mxu0 0.0
  %225 = vmatprep.subr.mxu0 0.0
  %226 = vmatpush1.msra.mxu0 0.0
  %227 = vmatprep.subr.mxu0 0.0
  %228 = vmatpush1.msra.mxu0 0.0
  %229 = vmatprep.subr.mxu0 0.0
  %230 = vmatpush1.msra.mxu0 0.0
  %231 = vmatprep.subr.mxu0 0.0
  %232 = vmatpush1.msra.mxu0 0.0
  %233 = vmatprep.subr.mxu0 0.0
  %234 = vmatpush1.msra.mxu0 0.0
  %235 = vmatprep.subr.mxu0 0.0
  %236 = vmatpush1.msra.mxu0 0.0
  %237 = vmatprep.subr.mxu0 0.0
  %238 = vmatpush1.msra.mxu0 0.0
  %239 = vmatprep.subr.mxu0 0.0
  %240 = vmatpush1.msra.mxu0 0.0
  %241 = vmatprep.subr.mxu0 0.0
  %242 = vmatpush1.msra.mxu0 0.0
  %243 = vmatprep.subr.mxu0 0.0
  %244 = vmatpush1.msra.mxu0 0.0
  %245 = vmatprep.subr.mxu0 0.0
  %246 = vmatpush1.msra.mxu0 0.0
  %247 = vmatprep.subr.mxu0 0.0
  %248 = vmatpush1.msra.mxu0 0.0
  %249 = vmatprep.mubr.f32.mxu0 0.0
  %250 = vmatmul.mubr.f32.gmra.mrb[0].mxu0 %v20
  %v251 = vpop.f32.mrb[0].mxu0
  %v252 = vadd.f32 %v99, %v251
  %v253 = vpop.f32.mrb[0].mxu0
  %v254 = vadd.f32 %v103, %v253
  %255 = vmatprep.mubr.f32.mxu0 0.0
  %256 = vmatmul.mubr.f32.gmra.mrb[0].mxu0 %v21
  %v257 = vpop.f32.mrb[0].mxu0
  %v258 = vadd.f32 %v99, %v257
  %v259 = vpop.f32.mrb[0].mxu0
  %v260 = vadd.f32 %v103, %v259
  %261 = vdwg.mxu0
  %v262 = vmul.f32 %v175, 0.5
  %v263 = vmul.f32 %v177, 0.5
  %v264 = vmul.f32 %v252, 0.5
  %v265 = vmul.f32 %v254, 0.5
  %v266 = vmul.f32 %v181, 0.5
  %v267 = vmul.f32 %v183, 0.5
  %v268 = vmul.f32 %v258, 0.5
  %v269 = vmul.f32 %v260, 0.5
  %v270 = vmul.f32 %v175, 0.70710677
  %v271 = vmul.f32 %v177, 0.70710677
  %v272 = vmul.f32 %v252, 0.70710677
  %v273 = vmul.f32 %v254, 0.70710677
  %v274 = vmul.f32 %v181, 0.70710677
  %v275 = vmul.f32 %v183, 0.70710677
  %v276 = vmul.f32 %v258, 0.70710677
  %v277 = vmul.f32 %v260, 0.70710677
  %v278 = verf.f32.pop %v270
  %v279 = verf.f32.pop %v271
  %v280 = verf.f32.pop %v272
  %v281 = verf.f32.pop %v273
  %v282 = verf.f32.pop %v274
  %v283 = verf.f32.pop %v275
  %v284 = verf.f32.pop %v276
  %v285 = verf.f32.pop %v277
  %v286 = vadd.f32 %v278, 1.0
  %v287 = vadd.f32 %v279, 1.0
  %v288 = vadd.f32 %v280, 1.0
  %v289 = vadd.f32 %v281, 1.0
  %v290 = vadd.f32 %v282, 1.0
  %v291 = vadd.f32 %v283, 1.0
  %v292 = vadd.f32 %v284, 1.0
  %v293 = vadd.f32 %v285, 1.0
  %v294 = vmul.f32 %v262, %v286
  %v295 = vmul.f32 %v263, %v287
  %v296 = vmul.f32 %v264, %v288
  %v297 = vmul.f32 %v265, %v289
  %v298 = vmul.f32 %v266, %v290
  %v299 = vmul.f32 %v267, %v291
  %v300 = vmul.f32 %v268, %v292
  %v301 = vmul.f32 %v269, %v293
  %v302 = vld [vmem:[%s3] sm:$0xff]
  %v303 = vld [vmem:[%s3 + $0x8] sm:$0xff]
  %v304 = vld [vmem:[%s3 + $0x10] sm:$0xff]
  %v305 = vld [vmem:[%s3 + $0x18] sm:$0xff]
  %v306 = vld [vmem:[%s3 + $0x20] sm:$0xff]
  %v307 = vld [vmem:[%s3 + $0x28] sm:$0xff]
  %v308 = vld [vmem:[%s3 + $0x30] sm:$0xff]
  %v309 = vld [vmem:[%s3 + $0x38] sm:$0xff]
  %v310 = vld [vmem:[%s3 + $0x40] sm:$0xff]
  %v311 = vld [vmem:[%s3 + $0x48] sm:$0xff]
  %v312 = vld [vmem:[%s3 + $0x50] sm:$0xff]
  %v313 = vld [vmem:[%s3 + $0x58] sm:$0xff]
  %v314 = vld [vmem:[%s3 + $0x60] sm:$0xff]
  %v315 = vld [vmem:[%s3 + $0x68] sm:$0xff]
  %v316 = vld [vmem:[%s3 + $0x70] sm:$0xff]
  %v317 = vld [vmem:[%s3 + $0x78] sm:$0xff]
  %v318 = vld [vmem:[%s3 + $0x80] sm:$0xff]
  %v319 = vld [vmem:[%s3 + $0x88] sm:$0xff]
  %v320 = vld [vmem:[%s3 + $0x90] sm:$0xff]
  %v321 = vld [vmem:[%s3 + $0x98] sm:$0xff]
  %v322 = vld [vmem:[%s3 + $0xa0] sm:$0xff]
  %v323 = vld [vmem:[%s3 + $0xa8] sm:$0xff]
  %v324 = vld [vmem:[%s3 + $0xb0] sm:$0xff]
  %v325 = vld [vmem:[%s3 + $0xb8] sm:$0xff]
  %v326 = vld [vmem:[%s3 + $0xc0] sm:$0xff]
  %v327 = vld [vmem:[%s3 + $0xc8] sm:$0xff]
  %v328 = vld [vmem:[%s3 + $0xd0] sm:$0xff]
  %v329 = vld [vmem:[%s3 + $0xd8] sm:$0xff]
  %v330 = vld [vmem:[%s3 + $0xe0] sm:$0xff]
  %v331 = vld [vmem:[%s3 + $0xe8] sm:$0xff]
  %v332 = vld [vmem:[%s3 + $0xf0] sm:$0xff]
  %v333 = vld [vmem:[%s3 + $0xf8] sm:$0xff]
  %v334 = vld [vmem:[%s3 + $0x100] sm:$0xff]
  %v335 = vld [vmem:[%s3 + $0x108] sm:$0xff]
  %v336 = vld [vmem:[%s3 + $0x110] sm:$0xff]
  %v337 = vld [vmem:[%s3 + $0x118] sm:$0xff]
  %v338 = vld [vmem:[%s3 + $0x120] sm:$0xff]
  %v339 = vld [vmem:[%s3 + $0x128] sm:$0xff]
  %v340 = vld [vmem:[%s3 + $0x130] sm:$0xff]
  %v341 = vld [vmem:[%s3 + $0x138] sm:$0xff]
  %v342 = vld [vmem:[%s3 + $0x140] sm:$0xff]
  %v343 = vld [vmem:[%s3 + $0x148] sm:$0xff]
  %v344 = vld [vmem:[%s3 + $0x150] sm:$0xff]
  %v345 = vld [vmem:[%s3 + $0x158] sm:$0xff]
  %v346 = vld [vmem:[%s3 + $0x160] sm:$0xff]
  %v347 = vld [vmem:[%s3 + $0x168] sm:$0xff]
  %v348 = vld [vmem:[%s3 + $0x170] sm:$0xff]
  %v349 = vld [vmem:[%s3 + $0x178] sm:$0xff]
  %v350 = vld [vmem:[%s3 + $0x180] sm:$0xff]
  %v351 = vld [vmem:[%s3 + $0x188] sm:$0xff]
  %v352 = vld [vmem:[%s3 + $0x190] sm:$0xff]
  %v353 = vld [vmem:[%s3 + $0x198] sm:$0xff]
  %v354 = vld [vmem:[%s3 + $0x1a0] sm:$0xff]
  %v355 = vld [vmem:[%s3 + $0x1a8] sm:$0xff]
  %v356 = vld [vmem:[%s3 + $0x1b0] sm:$0xff]
  %v357 = vld [vmem:[%s3 + $0x1b8] sm:$0xff]
  %v358 = vld [vmem:[%s3 + $0x1c0] sm:$0xff]
  %v359 = vld [vmem:[%s3 + $0x1c8] sm:$0xff]
  %v360 = vld [vmem:[%s3 + $0x1d0] sm:$0xff]
  %v361 = vld [vmem:[%s3 + $0x1d8] sm:$0xff]
  %v362 = vld [vmem:[%s3 + $0x1e0] sm:$0xff]
  %v363 = vld [vmem:[%s3 + $0x1e8] sm:$0xff]
  %v364 = vld [vmem:[%s3 + $0x1f0] sm:$0xff]
  %v365 = vld [vmem:[%s3 + $0x1f8] sm:$0xff]
  %v366 = vld [vmem:[%s4] sm:$0x1]
  %v368 = vlaneseq
  %v369 = vshrl.u32 %v368, 7
  %v370 = vsub.s32 0, %v369
  %v371 = vrot.slane %v366, %v370
  %373 = vmatprep.subr.mxu0 0.0
  %374 = vmatpush1.msra.mxu0 %v302
  %375 = vmatprep.subr.mxu0 0.0
  %376 = vmatpush1.msra.mxu0 %v303
  %377 = vmatprep.subr.mxu0 0.0
  %378 = vmatpush1.msra.mxu0 %v304
  %379 = vmatprep.subr.mxu0 0.0
  %380 = vmatpush1.msra.mxu0 %v305
  %381 = vmatprep.subr.mxu0 0.0
  %382 = vmatpush1.msra.mxu0 %v306
  %383 = vmatprep.subr.mxu0 0.0
  %384 = vmatpush1.msra.mxu0 %v307
  %385 = vmatprep.subr.mxu0 0.0
  %386 = vmatpush1.msra.mxu0 %v308
  %387 = vmatprep.subr.mxu0 0.0
  %388 = vmatpush1.msra.mxu0 %v309
  %389 = vmatprep.subr.mxu0 0.0
  %390 = vmatpush1.msra.mxu0 %v310
  %391 = vmatprep.subr.mxu0 0.0
  %392 = vmatpush1.msra.mxu0 %v311
  %393 = vmatprep.subr.mxu0 0.0
  %394 = vmatpush1.msra.mxu0 %v312
  %395 = vmatprep.subr.mxu0 0.0
  %396 = vmatpush1.msra.mxu0 %v313
  %397 = vmatprep.subr.mxu0 0.0
  %398 = vmatpush1.msra.mxu0 %v314
  %399 = vmatprep.subr.mxu0 0.0
  %400 = vmatpush1.msra.mxu0 %v315
  %401 = vmatprep.subr.mxu0 0.0
  %402 = vmatpush1.msra.mxu0 %v316
  %403 = vmatprep.subr.mxu0 0.0
  %404 = vmatpush1.msra.mxu0 %v317
  %405 = vmatprep.subr.mxu0 0.0
  %406 = vmatpush1.msra.mxu0 %v318
  %407 = vmatprep.subr.mxu0 0.0
  %408 = vmatpush1.msra.mxu0 %v319
  %409 = vmatprep.subr.mxu0 0.0
  %410 = vmatpush1.msra.mxu0 %v320
  %411 = vmatprep.subr.mxu0 0.0
  %412 = vmatpush1.msra.mxu0 %v321
  %413 = vmatprep.subr.mxu0 0.0
  %414 = vmatpush1.msra.mxu0 %v322
  %415 = vmatprep.subr.mxu0 0.0
  %416 = vmatpush1.msra.mxu0 %v323
  %417 = vmatprep.subr.mxu0 0.0
  %418 = vmatpush1.msra.mxu0 %v324
  %419 = vmatprep.subr.mxu0 0.0
  %420 = vmatpush1.msra.mxu0 %v325
  %421 = vmatprep.subr.mxu0 0.0
  %422 = vmatpush1.msra.mxu0 %v326
  %423 = vmatprep.subr.mxu0 0.0
  %424 = vmatpush1.msra.mxu0 %v327
  %425 = vmatprep.subr.mxu0 0.0
  %426 = vmatpush1.msra.mxu0 %v328
  %427 = vmatprep.subr.mxu0 0.0
  %428 = vmatpush1.msra.mxu0 %v329
  %429 = vmatprep.subr.mxu0 0.0
  %430 = vmatpush1.msra.mxu0 %v330
  %431 = vmatprep.subr.mxu0 0.0
  %432 = vmatpush1.msra.mxu0 %v331
  %433 = vmatprep.subr.mxu0 0.0
  %434 = vmatpush1.msra.mxu0 %v332
  %435 = vmatprep.subr.mxu0 0.0
  %436 = vmatpush1.msra.mxu0 %v333
  %437 = vmatprep.mubr.f32.mxu0 %v295
  %438 = vmatmul.mubr.f32.gmra.mrb[0].mxu0 %v294
  %v439 = vpop.f32.mrb[0].mxu0
  %v440 = vadd.f32 %v371, %v439
  %v441 = vpop.f32.mrb[0].mxu0
  %442 = vmatprep.mubr.f32.mxu0 %v299
  %443 = vmatmul.mubr.f32.gmra.mrb[0].mxu0 %v298
  %v444 = vpop.f32.mrb[0].mxu0
  %v445 = vadd.f32 %v371, %v444
  %v446 = vpop.f32.mrb[0].mxu0
  %447 = vdwg.mxu0
  %448 = vmatprep.subr.mxu0 0.0
  %449 = vmatpush1.msra.mxu0 %v334
  %450 = vmatprep.subr.mxu0 0.0
  %451 = vmatpush1.msra.mxu0 %v335
  %452 = vmatprep.subr.mxu0 0.0
  %453 = vmatpush1.msra.mxu0 %v336
  %454 = vmatprep.subr.mxu0 0.0
  %455 = vmatpush1.msra.mxu0 %v337
  %456 = vmatprep.subr.mxu0 0.0
  %457 = vmatpush1.msra.mxu0 %v338
  %458 = vmatprep.subr.mxu0 0.0
  %459 = vmatpush1.msra.mxu0 %v339
  %460 = vmatprep.subr.mxu0 0.0
  %461 = vmatpush1.msra.mxu0 %v340
  %462 = vmatprep.subr.mxu0 0.0
  %463 = vmatpush1.msra.mxu0 %v341
  %464 = vmatprep.subr.mxu0 0.0
  %465 = vmatpush1.msra.mxu0 %v342
  %466 = vmatprep.subr.mxu0 0.0
  %467 = vmatpush1.msra.mxu0 %v343
  %468 = vmatprep.subr.mxu0 0.0
  %469 = vmatpush1.msra.mxu0 %v344
  %470 = vmatprep.subr.mxu0 0.0
  %471 = vmatpush1.msra.mxu0 %v345
  %472 = vmatprep.subr.mxu0 0.0
  %473 = vmatpush1.msra.mxu0 %v346
  %474 = vmatprep.subr.mxu0 0.0
  %475 = vmatpush1.msra.mxu0 %v347
  %476 = vmatprep.subr.mxu0 0.0
  %477 = vmatpush1.msra.mxu0 %v348
  %478 = vmatprep.subr.mxu0 0.0
  %479 = vmatpush1.msra.mxu0 %v349
  %480 = vmatprep.subr.mxu0 0.0
  %481 = vmatpush1.msra.mxu0 %v350
  %482 = vmatprep.subr.mxu0 0.0
  %483 = vmatpush1.msra.mxu0 %v351
  %484 = vmatprep.subr.mxu0 0.0
  %485 = vmatpush1.msra.mxu0 %v352
  %486 = vmatprep.subr.mxu0 0.0
  %487 = vmatpush1.msra.mxu0 %v353
  %488 = vmatprep.subr.mxu0 0.0
  %489 = vmatpush1.msra.mxu0 %v354
  %490 = vmatprep.subr.mxu0 0.0
  %491 = vmatpush1.msra.mxu0 %v355
  %492 = vmatprep.subr.mxu0 0.0
  %493 = vmatpush1.msra.mxu0 %v356
  %494 = vmatprep.subr.mxu0 0.0
  %495 = vmatpush1.msra.mxu0 %v357
  %496 = vmatprep.subr.mxu0 0.0
  %497 = vmatpush1.msra.mxu0 %v358
  %498 = vmatprep.subr.mxu0 0.0
  %499 = vmatpush1.msra.mxu0 %v359
  %500 = vmatprep.subr.mxu0 0.0
  %501 = vmatpush1.msra.mxu0 %v360
  %502 = vmatprep.subr.mxu0 0.0
  %503 = vmatpush1.msra.mxu0 %v361
  %504 = vmatprep.subr.mxu0 0.0
  %505 = vmatpush1.msra.mxu0 %v362
  %506 = vmatprep.subr.mxu0 0.0
  %507 = vmatpush1.msra.mxu0 %v363
  %508 = vmatprep.subr.mxu0 0.0
  %509 = vmatpush1.msra.mxu0 %v364
  %510 = vmatprep.subr.mxu0 0.0
  %511 = vmatpush1.msra.mxu0 %v365
  %512 = vmatprep.mubr.f32.mxu0 %v297
  %513 = vmatmul.mubr.f32.gmra.mrb[0].mxu0 %v296
  %v514 = vpop.f32.mrb[0].mxu0
  %v515 = vadd.f32 %v440, %v514
  %v516 = vpop.f32.mrb[0].mxu0
  %517 = vmatprep.mubr.f32.mxu0 %v301
  %518 = vmatmul.mubr.f32.gmra.mrb[0].mxu0 %v300
  %v519 = vpop.f32.mrb[0].mxu0
  %v520 = vadd.f32 %v445, %v519
  %v521 = vpop.f32.mrb[0].mxu0
  %522 = vdwg.mxu0
  %523 = vst [vmem:[%s5] sm:$0xff] %v515
  %524 = vst [vmem:[%s5 + $0x8] sm:$0xff] %v520
  // Predicated region
  $region22: #{conv_mlp.1} parent=0 // pred_check
    _
  $region23: #{conv_mlp.1} parent=0 // pred_check_branch
    %526 = sbr.rel (0) target = $region25
  $region24: #{conv_mlp.1} parent=0 // pred_region
    _
  $region25: #{conv_mlp.1} parent=0 // pred_fallthru
    _
  // Predicated region
  $region26: #{conv_mlp.1} parent=0 // pred_check
    _
  $region27: #{conv_mlp.1} parent=0 // pred_check_branch
    %528 = sbr.rel (0) target = $region29
  $region28: #{conv_mlp.1} parent=0 // pred_region
    _
  $region29: #{conv_mlp.1} parent=0 // pred_fallthru
    _

</llo_original>
